<compile_context>
chip_gen: v7x
topology: tpu7x:2x2x1
jax: 0.10.0
libtpu: 0.0.40
codegen_flags: <defaults>
</compile_context>

<pallas_src>
import numpy as np
import jax
import jax.numpy as jnp
from jax import lax
from jax.experimental import pallas as pl
from jax.experimental.pallas import tpu as pltpu

_SQRT1_2 = 1.0 / np.sqrt(2.0)
_PAD = 128  # lane width; hidden/output feature dims padded to this


def _gelu_exact(x):
    # PyTorch nn.GELU() default is the exact erf formulation (reference only).
    return 0.5 * x * (1.0 + lax.erf(x * _SQRT1_2))


def _round_up(v, m):
    return (v + m - 1) // m * m


def _choose_tiling(B):
    """Pick (TM rows per tile, padded batch size).

    - tiny batch  : one tile (no per-step overhead)
    - mid batch   : 2 tiles so the "parallel" grid axis can shard across v7x's
                    2 TensorCores (no-op on single-TC v5e/v6e)
    - large batch : ~512-row tiles with >= 4 grid steps -> 0.35us/step overhead is
                    amortized and padding waste stays < one small tile
    """
    B8 = _round_up(B, 8)
    if B8 <= 128:
        return B8, B8
    if B8 <= 512:
        tm = _round_up(pl.cdiv(B8, 2), 8)
        return tm, _round_up(B8, tm)
    n_tiles = max(4, pl.cdiv(B8, 512))
    tm = _round_up(pl.cdiv(B8, n_tiles), 8)
    return tm, _round_up(B8, tm)


def _mlp_kernel(x_ref, w_ref, b_ref, out_ref):
    # x_ref:   (TM, D8)        batch tile (only the real input lanes, 8-padded)
    # w_ref:   (L, 128, 128)   BN+GELU-constant-folded weights (grid-resident)
    # b_ref:   (L, 1, 128)     folded biases (grid-resident)
    # out_ref: (TM, 128)       lane-dense output tile
    n_layers = w_ref.shape[0]
    d_in = x_ref.shape[-1]

    # Layer 0: K = real input width (static slice of the weight slab avoids any
    # 128-lane padding / DMA of x).
    h = jnp.dot(x_ref[...], w_ref[0, :d_in, :],
                preferred_element_type=jnp.float32) + b_ref[0]
    h = h * (1.0 + lax.erf(h))  # GELU: the 0.5 and 1/sqrt(2) live in the weights

    for l in range(1, n_layers - 1):
        h = jnp.dot(h, w_ref[l], preferred_element_type=jnp.float32) + b_ref[l]
        h = h * (1.0 + lax.erf(h))
        # Dropout(p=0.1) is identity in eval mode.

    out_ref[...] = (
        jnp.dot(h, w_ref[n_layers - 1], preferred_element_type=jnp.float32)
        + b_ref[n_layers - 1]
    )


def eeg_classifier_forward(x, w_slab, b_slab, output_dim):
    """x: (B, input_dim) f32; w_slab: (L,128,128); b_slab: (L,1,128)."""
    B, D = x.shape
    n_layers = w_slab.shape[0]
    D8 = _round_up(D, 8)                 # tiny sublane pad only (no 128-lane pad)
    TM, B_pad = _choose_tiling(B)
    n_tiles = B_pad // TM

    if B_pad == B and D8 == D:
        x_p = x
    else:
        x_p = jnp.zeros((B_pad, D8), jnp.float32).at[:B, :D].set(x)

    flops = 2 * B_pad * _PAD * (D8 + _PAD * (n_layers - 1))
    transcendentals = B_pad * _PAD * (n_layers - 1)
    bytes_accessed = 4 * (B_pad * D8 + int(w_slab.size) + int(b_slab.size)
                          + B_pad * _PAD)

    out_p = pl.pallas_call(
        _mlp_kernel,
        out_shape=jax.ShapeDtypeStruct((B_pad, _PAD), jnp.float32),
        grid_spec=pltpu.PrefetchScalarGridSpec(
            num_scalar_prefetch=0,
            grid=(n_tiles,),
            in_specs=[
                pl.BlockSpec((TM, D8), lambda i: (i, 0)),                   # x tile
                pl.BlockSpec((n_layers, _PAD, _PAD), lambda i: (0, 0, 0)),  # weights
                pl.BlockSpec((n_layers, 1, _PAD), lambda i: (0, 0, 0)),     # biases
            ],
            out_specs=pl.BlockSpec((TM, _PAD), lambda i: (i, 0)),
        ),
        compiler_params=pltpu.CompilerParams(
            dimension_semantics=("parallel",),
        ),
        cost_estimate=pl.CostEstimate(
            flops=flops,
            transcendentals=transcendentals,
            bytes_accessed=bytes_accessed,
        ),
    )(x_p, w_slab, b_slab)

    return out_p[:B, :output_dim]


def make_params(key, input_dim, output_dim, neurons):
    """Deterministic synthetic parameters: [w,b,scale,shift]*5 + [w_out,b_out]
    (scale/shift are the eval-mode BatchNorm1d affine folded from gamma/beta/stats)."""
    dims = [input_dim] + list(neurons)
    params = []
    eps = 1e-5
    keys = jax.random.split(key, 6 * len(neurons) + 2)
    k = 0
    for i in range(len(neurons)):
        d_in, d_out = dims[i], dims[i + 1]
        w = jax.random.normal(keys[k], (d_in, d_out), jnp.float32) * (1.0 / np.sqrt(d_in)); k += 1
        b = jax.random.normal(keys[k], (1, d_out), jnp.float32) * 0.1; k += 1
        gamma = 1.0 + 0.1 * jax.random.normal(keys[k], (1, d_out), jnp.float32); k += 1
        beta = 0.1 * jax.random.normal(keys[k], (1, d_out), jnp.float32); k += 1
        running_mean = 0.1 * jax.random.normal(keys[k], (1, d_out), jnp.float32); k += 1
        running_var = jnp.abs(jax.random.normal(keys[k], (1, d_out), jnp.float32)) + 0.5; k += 1
        scale = gamma / jnp.sqrt(running_var + eps)
        shift = beta - running_mean * scale
        params += [w, b, scale, shift]
    d_in, d_out = dims[-1], output_dim
    w_out = jax.random.normal(keys[k], (d_in, d_out), jnp.float32) * (1.0 / np.sqrt(d_in)); k += 1
    b_out = jax.random.normal(keys[k], (1, d_out), jnp.float32) * 0.1; k += 1
    params += [w_out, b_out]
    return params


def pack_params(params, pad=_PAD):
    """Fold BatchNorm scale/shift AND the GELU constants into the Linear weights/
    biases, packing all layers into two zero-padded slabs: (L,pad,pad) and (L,1,pad).

    The kernel's running activation g equals prev_scale * (true activation); the
    pre-activation is pre-divided by sqrt(2) so the kernel computes h*(1+erf(h)).
      hidden l:  W' = (W*s) / (prev_scale*sqrt(2)),  b' = (b*s + t) / sqrt(2)
      output  :  W' =  W_out / prev_scale,           b' =  b_out
    with prev_scale = 1 before the first layer and sqrt(2) after every hidden GELU.
    """
    n_hidden = (len(params) - 2) // 4
    n_layers = n_hidden + 1
    w_slab = np.zeros((n_layers, pad, pad), np.float32)
    b_slab = np.zeros((n_layers, 1, pad), np.float32)
    inv_sqrt2 = 1.0 / np.sqrt(2.0)
    prev_scale = 1.0
    idx = 0
    for l in range(n_hidden):
        w, b, s, t = (np.asarray(p, np.float32) for p in params[idx:idx + 4])
        idx += 4
        w_f = (w * s) * (inv_sqrt2 / prev_scale)   # BN fold + GELU constant fold
        b_f = (b * s + t) * inv_sqrt2
        d_in, d_out = w_f.shape
        w_slab[l, :d_in, :d_out] = w_f
        b_slab[l, :, :d_out] = b_f
        prev_scale = np.sqrt(2.0)
    w_out = np.asarray(params[idx], np.float32)
    b_out = np.asarray(params[idx + 1], np.float32)
    w_out_f = w_out / prev_scale
    d_in, d_out = w_out_f.shape
    w_slab[n_layers - 1, :d_in, :d_out] = w_out_f
    b_slab[n_layers - 1, :, :d_out] = b_out
    return jnp.asarray(w_slab), jnp.asarray(b_slab)


def reference_forward(x, params):
    """Pure-JAX reference matching the PyTorch forward (eval mode), unfolded params."""
    h = x
    idx = 0
    n_hidden = (len(params) - 2) // 4
    for _ in range(n_hidden):
        w, b, s, t = params[idx:idx + 4]
        idx += 4
        h = h @ w + b          # Linear
        h = h * s + t          # BatchNorm1d (eval)
        h = _gelu_exact(h)     # GELU; Dropout is identity in eval
    w_out, b_out = params[idx], params[idx + 1]
    return h @ w_out + b_out


if __name__ == "__main__":
    input_dim = 32
    output_dim = 8
    neurons = (64, 64, 48, 48, 32)
    batch = 16

    key = jax.random.PRNGKey(0)
    kx, kp = jax.random.split(key)
    x = jax.random.normal(kx, (batch, input_dim), jnp.float32)
    params = make_params(kp, input_dim, output_dim, neurons)
    w_slab, b_slab = pack_params(params)

    out = eeg_classifier_forward(x, w_slab, b_slab, output_dim)
    out = jax.block_until_ready(out)

    ref = reference_forward(x, params)
    assert out.shape == (batch, output_dim)
    # BN/GELU constant folding changes rounding order slightly (~1e-6); small margin.
    np.testing.assert_allclose(np.asarray(out), np.asarray(ref), rtol=2e-5, atol=2e-5)

    print("KERNEL_OK")
</pallas_src>

<mosaic_0001>
module attributes {stable_mosaic.version = 11 : i64} {
  func.func @_mlp_kernel(%arg0: i32, %arg1: memref<16x32xf32, #tpu.memory_space<vmem>>, %arg2: memref<6x128x128xf32, #tpu.memory_space<vmem>>, %arg3: memref<6x1x128xf32, #tpu.memory_space<vmem>>, %arg4: memref<16x128xf32, #tpu.memory_space<vmem>>) attributes {dimension_semantics = [#tpu.dimension_semantics<parallel>], iteration_bounds = array<i64: 1>, scalar_prefetch = 0 : i64, scratch_operands = 0 : i64, tpu.core_type = #tpu.core_type<tc>, window_params = [{transform_indices = @transform_0, window_bounds = array<i64: 16, 32>}, {pipeline_mode = #tpu.pipeline_mode<synchronous>, transform_indices = @transform_1, window_bounds = array<i64: 6, 128, 128>}, {pipeline_mode = #tpu.pipeline_mode<synchronous>, transform_indices = @transform_2, window_bounds = array<i64: 6, 1, 128>}, {transform_indices = @transform_3, window_bounds = array<i64: 16, 128>}]} {
    %c0 = arith.constant 0 : index
    %c0_0 = arith.constant 0 : index
    %0 = vector.load %arg1[%c0, %c0_0] : memref<16x32xf32, #tpu.memory_space<vmem>>, vector<16x32xf32>
    %c0_1 = arith.constant 0 : index
    %c0_2 = arith.constant 0 : index
    %c0_3 = arith.constant 0 : index
    %1 = vector.load %arg2[%c0_1, %c0_2, %c0_3] : memref<6x128x128xf32, #tpu.memory_space<vmem>>, vector<1x32x128xf32>
    %2 = vector.shape_cast %1 : vector<1x32x128xf32> to vector<32x128xf32>
    %cst = arith.constant dense<0.000000e+00> : vector<16x128xf32>
    %3 = tpu.matmul %0, %2, %cst {dimension_numbers = #tpu.dot_dimension_numbers<[1], [0], [0], [1], [0, 0, 1, 1], [], []>} : vector<16x32xf32>, vector<32x128xf32>, vector<16x128xf32> -> vector<16x128xf32>
    %c0_4 = arith.constant 0 : index
    %c0_5 = arith.constant 0 : index
    %c0_6 = arith.constant 0 : index
    %4 = vector.load %arg3[%c0_4, %c0_5, %c0_6] : memref<6x1x128xf32, #tpu.memory_space<vmem>>, vector<1x1x128xf32>
    %5 = vector.shape_cast %4 : vector<1x1x128xf32> to vector<1x128xf32>
    %6 = vector.broadcast %5 : vector<1x128xf32> to vector<16x128xf32>
    %7 = arith.addf %3, %6 : vector<16x128xf32>
    %8 = math.erf %7 : vector<16x128xf32>
    %cst_7 = arith.constant 1.000000e+00 : f32
    %9 = vector.broadcast %cst_7 : f32 to vector<16x128xf32>
    %10 = arith.addf %9, %8 : vector<16x128xf32>
    %11 = arith.mulf %7, %10 : vector<16x128xf32>
    %c1 = arith.constant 1 : index
    %c0_8 = arith.constant 0 : index
    %c0_9 = arith.constant 0 : index
    %12 = vector.load %arg2[%c1, %c0_8, %c0_9] : memref<6x128x128xf32, #tpu.memory_space<vmem>>, vector<1x128x128xf32>
    %13 = vector.shape_cast %12 : vector<1x128x128xf32> to vector<128x128xf32>
    %cst_10 = arith.constant dense<0.000000e+00> : vector<16x128xf32>
    %14 = tpu.matmul %11, %13, %cst_10 {dimension_numbers = #tpu.dot_dimension_numbers<[1], [0], [0], [1], [0, 0, 1, 1], [], []>} : vector<16x128xf32>, vector<128x128xf32>, vector<16x128xf32> -> vector<16x128xf32>
    %c1_11 = arith.constant 1 : index
    %c0_12 = arith.constant 0 : index
    %c0_13 = arith.constant 0 : index
    %15 = vector.load %arg3[%c1_11, %c0_12, %c0_13] : memref<6x1x128xf32, #tpu.memory_space<vmem>>, vector<1x1x128xf32>
    %16 = vector.shape_cast %15 : vector<1x1x128xf32> to vector<1x128xf32>
    %17 = vector.broadcast %16 : vector<1x128xf32> to vector<16x128xf32>
    %18 = arith.addf %14, %17 : vector<16x128xf32>
    %19 = math.erf %18 : vector<16x128xf32>
    %cst_14 = arith.constant 1.000000e+00 : f32
    %20 = vector.broadcast %cst_14 : f32 to vector<16x128xf32>
    %21 = arith.addf %20, %19 : vector<16x128xf32>
    %22 = arith.mulf %18, %21 : vector<16x128xf32>
    %c2 = arith.constant 2 : index
    %c0_15 = arith.constant 0 : index
    %c0_16 = arith.constant 0 : index
    %23 = vector.load %arg2[%c2, %c0_15, %c0_16] : memref<6x128x128xf32, #tpu.memory_space<vmem>>, vector<1x128x128xf32>
    %24 = vector.shape_cast %23 : vector<1x128x128xf32> to vector<128x128xf32>
    %cst_17 = arith.constant dense<0.000000e+00> : vector<16x128xf32>
    %25 = tpu.matmul %22, %24, %cst_17 {dimension_numbers = #tpu.dot_dimension_numbers<[1], [0], [0], [1], [0, 0, 1, 1], [], []>} : vector<16x128xf32>, vector<128x128xf32>, vector<16x128xf32> -> vector<16x128xf32>
    %c2_18 = arith.constant 2 : index
    %c0_19 = arith.constant 0 : index
    %c0_20 = arith.constant 0 : index
    %26 = vector.load %arg3[%c2_18, %c0_19, %c0_20] : memref<6x1x128xf32, #tpu.memory_space<vmem>>, vector<1x1x128xf32>
    %27 = vector.shape_cast %26 : vector<1x1x128xf32> to vector<1x128xf32>
    %28 = vector.broadcast %27 : vector<1x128xf32> to vector<16x128xf32>
    %29 = arith.addf %25, %28 : vector<16x128xf32>
    %30 = math.erf %29 : vector<16x128xf32>
    %cst_21 = arith.constant 1.000000e+00 : f32
    %31 = vector.broadcast %cst_21 : f32 to vector<16x128xf32>
    %32 = arith.addf %31, %30 : vector<16x128xf32>
    %33 = arith.mulf %29, %32 : vector<16x128xf32>
    %c3 = arith.constant 3 : index
    %c0_22 = arith.constant 0 : index
    %c0_23 = arith.constant 0 : index
    %34 = vector.load %arg2[%c3, %c0_22, %c0_23] : memref<6x128x128xf32, #tpu.memory_space<vmem>>, vector<1x128x128xf32>
    %35 = vector.shape_cast %34 : vector<1x128x128xf32> to vector<128x128xf32>
    %cst_24 = arith.constant dense<0.000000e+00> : vector<16x128xf32>
    %36 = tpu.matmul %33, %35, %cst_24 {dimension_numbers = #tpu.dot_dimension_numbers<[1], [0], [0], [1], [0, 0, 1, 1], [], []>} : vector<16x128xf32>, vector<128x128xf32>, vector<16x128xf32> -> vector<16x128xf32>
    %c3_25 = arith.constant 3 : index
    %c0_26 = arith.constant 0 : index
    %c0_27 = arith.constant 0 : index
    %37 = vector.load %arg3[%c3_25, %c0_26, %c0_27] : memref<6x1x128xf32, #tpu.memory_space<vmem>>, vector<1x1x128xf32>
    %38 = vector.shape_cast %37 : vector<1x1x128xf32> to vector<1x128xf32>
    %39 = vector.broadcast %38 : vector<1x128xf32> to vector<16x128xf32>
    %40 = arith.addf %36, %39 : vector<16x128xf32>
    %41 = math.erf %40 : vector<16x128xf32>
    %cst_28 = arith.constant 1.000000e+00 : f32
    %42 = vector.broadcast %cst_28 : f32 to vector<16x128xf32>
    %43 = arith.addf %42, %41 : vector<16x128xf32>
    %44 = arith.mulf %40, %43 : vector<16x128xf32>
    %c4 = arith.constant 4 : index
    %c0_29 = arith.constant 0 : index
    %c0_30 = arith.constant 0 : index
    %45 = vector.load %arg2[%c4, %c0_29, %c0_30] : memref<6x128x128xf32, #tpu.memory_space<vmem>>, vector<1x128x128xf32>
    %46 = vector.shape_cast %45 : vector<1x128x128xf32> to vector<128x128xf32>
    %cst_31 = arith.constant dense<0.000000e+00> : vector<16x128xf32>
    %47 = tpu.matmul %44, %46, %cst_31 {dimension_numbers = #tpu.dot_dimension_numbers<[1], [0], [0], [1], [0, 0, 1, 1], [], []>} : vector<16x128xf32>, vector<128x128xf32>, vector<16x128xf32> -> vector<16x128xf32>
    %c4_32 = arith.constant 4 : index
    %c0_33 = arith.constant 0 : index
    %c0_34 = arith.constant 0 : index
    %48 = vector.load %arg3[%c4_32, %c0_33, %c0_34] : memref<6x1x128xf32, #tpu.memory_space<vmem>>, vector<1x1x128xf32>
    %49 = vector.shape_cast %48 : vector<1x1x128xf32> to vector<1x128xf32>
    %50 = vector.broadcast %49 : vector<1x128xf32> to vector<16x128xf32>
    %51 = arith.addf %47, %50 : vector<16x128xf32>
    %52 = math.erf %51 : vector<16x128xf32>
    %cst_35 = arith.constant 1.000000e+00 : f32
    %53 = vector.broadcast %cst_35 : f32 to vector<16x128xf32>
    %54 = arith.addf %53, %52 : vector<16x128xf32>
    %55 = arith.mulf %51, %54 : vector<16x128xf32>
    %c5 = arith.constant 5 : index
    %c0_36 = arith.constant 0 : index
    %c0_37 = arith.constant 0 : index
    %56 = vector.load %arg2[%c5, %c0_36, %c0_37] : memref<6x128x128xf32, #tpu.memory_space<vmem>>, vector<1x128x128xf32>
    %57 = vector.shape_cast %56 : vector<1x128x128xf32> to vector<128x128xf32>
    %cst_38 = arith.constant dense<0.000000e+00> : vector<16x128xf32>
    %58 = tpu.matmul %55, %57, %cst_38 {dimension_numbers = #tpu.dot_dimension_numbers<[1], [0], [0], [1], [0, 0, 1, 1], [], []>} : vector<16x128xf32>, vector<128x128xf32>, vector<16x128xf32> -> vector<16x128xf32>
    %c5_39 = arith.constant 5 : index
    %c0_40 = arith.constant 0 : index
    %c0_41 = arith.constant 0 : index
    %59 = vector.load %arg3[%c5_39, %c0_40, %c0_41] : memref<6x1x128xf32, #tpu.memory_space<vmem>>, vector<1x1x128xf32>
    %60 = vector.shape_cast %59 : vector<1x1x128xf32> to vector<1x128xf32>
    %61 = vector.broadcast %60 : vector<1x128xf32> to vector<16x128xf32>
    %62 = arith.addf %58, %61 : vector<16x128xf32>
    %c0_42 = arith.constant 0 : index
    %c0_43 = arith.constant 0 : index
    %63 = vector.load %arg4[%c0_42, %c0_43] : memref<16x128xf32, #tpu.memory_space<vmem>>, vector<16x128xf32>
    tpu.vector_store %arg4[%c0_42, %c0_43], %62 {strides = array<i32>} : memref<16x128xf32, #tpu.memory_space<vmem>>, vector<16x128xf32>,
    return
  }
  func.func @transform_0(%arg0: i32) -> (i32, i32) {
    %c0_i32 = arith.constant 0 : i32
    %c0_i32_0 = arith.constant 0 : i32
    return %arg0, %c0_i32 : i32, i32
  }
  func.func @transform_1(%arg0: i32) -> (i32, i32, i32) {
    %c0_i32 = arith.constant 0 : i32
    %c0_i32_0 = arith.constant 0 : i32
    %c0_i32_1 = arith.constant 0 : i32
    %c0_i32_2 = arith.constant 0 : i32
    return %c0_i32, %c0_i32_0, %c0_i32_1 : i32, i32, i32
  }
  func.func @transform_2(%arg0: i32) -> (i32, i32, i32) {
    %c0_i32 = arith.constant 0 : i32
    %c0_i32_0 = arith.constant 0 : i32
    %c0_i32_1 = arith.constant 0 : i32
    %c0_i32_2 = arith.constant 0 : i32
    return %c0_i32, %c0_i32_0, %c0_i32_1 : i32, i32, i32
  }
  func.func @transform_3(%arg0: i32) -> (i32, i32) {
    %c0_i32 = arith.constant 0 : i32
    %c0_i32_0 = arith.constant 0 : i32
    return %arg0, %c0_i32 : i32, i32
  }
}

</mosaic_0001>

<llo_original>
// kernel: tpu_custom_call.1
$region0: #{tpu_custom_call.1}
  #allocation0 [shape = 'u32[]', space=smem, size = 0x4, offset = 0x4, fixed_abs, tag = 'smem constant byte address 0x4 - core index']
  #allocation1 [shape = 'u32[144,128]{1,0:T(1,128)}', space=vmem, size = 0x12000, scoped, tag = 'internal scratch']
  %s0 = inlined_call_operand.hbm [shape: f32[16,32], index: 0, kind: input, shape index: {}]
  %s1 = inlined_call_operand.hbm [shape: f32[6,128,128], index: 1, kind: input, shape index: {}]
  %s2 = inlined_call_operand.vmem [shape: f32[6,1,128], index: 2, kind: input, shape index: {}]
  %s3 = inlined_call_operand.hbm [shape: f32[16,128], index: 3, kind: output, shape index: {}]
  %s4 = sld [smem:[#allocation0]]
  $region30: #{tpu_custom_call.1} parent=0
    _
  %s6 = ssub.s32 1, %s4
  %s7 = scalar_select 0, %s6, %s4
  $region1: #{tpu_custom_call.1} parent=0
    #allocation2 [shape = 'u8[8192]{0}', space=vmem, size = 0x2000, scoped, tag = 'input window, operand 0, single buffered']
    #allocation3 [shape = 's32[1]{0}', space=sflag, size = 0x4, scoped, tag = 'scoped memory for tpu_custom_call.1']
    #allocation4 [shape = 's32[1]{0}', space=sflag, size = 0x4, scoped, tag = 'scoped memory for tpu_custom_call.1']
    #allocation5 [shape = 'u8[393216]{0}', space=vmem, size = 0x60000, scoped, tag = 'input window, operand 1, single buffered']
    #allocation6 [shape = 's32[1]{0}', space=sflag, size = 0x4, scoped, tag = 'scoped memory for tpu_custom_call.1']
    #allocation7 [shape = 'u8[8192]{0}', space=vmem, size = 0x2000, scoped, tag = 'output window, operand 0, single buffered']
    %8 = vsyncpa [#allocation3], 0
    %9 = vsyncpa [#allocation6], 0
    %10 = vsyncpa [#allocation4], 0
    // Predicated region
    $region2: #{tpu_custom_call.1} parent=1 // pred_check
      _
    $region3: #{tpu_custom_call.1} parent=1 // pred_check_branch
      %12 = sbr.rel (0) target = $region5
    $region4: #{tpu_custom_call.1} parent=1 // pred_region
      %s14 = ssub.s32 256, 256
      %15 = vsyncadd [#allocation3], %s14
      %s16 = sshll.u32 [#allocation2], 4
      %s17 = int_to_ptr.vmem [resolvable:$true] %s16
      %22 = dma.hbm_to_vmem [thread:$0]  %s0, 256, %s17, [#allocation3], 128, 128, 8
    $region5: #{tpu_custom_call.1} parent=1 // pred_fallthru
      _
    // Predicated region
    $region6: #{tpu_custom_call.1} parent=1 // pred_check
      _
    $region7: #{tpu_custom_call.1} parent=1 // pred_check_branch
      %24 = sbr.rel (0) target = $region9
    $region8: #{tpu_custom_call.1} parent=1 // pred_region
      %s26 = ssub.s32 12288, 12288
      %27 = vsyncadd [#allocation6], %s26
      %s28 = sshll.u32 [#allocation5], 4
      %s29 = int_to_ptr.vmem [resolvable:$true] %s28
      %34 = dma.hbm_to_vmem [thread:$0]  %s1, 12288, %s29, [#allocation6], 128, 128, 8
    $region9: #{tpu_custom_call.1} parent=1 // pred_fallthru
      _
    // Predicated region
    $region10: #{tpu_custom_call.1} parent=1 // pred_check
      _
    $region11: #{tpu_custom_call.1} parent=1 // pred_check_branch
      %36 = sbr.rel (0) target = $region13
    $region12: #{tpu_custom_call.1} parent=1 // pred_region
      _
    $region13: #{tpu_custom_call.1} parent=1 // pred_fallthru
      _
    // Predicated region
    $region14: #{tpu_custom_call.1} parent=1 // pred_check
      _
    $region15: #{tpu_custom_call.1} parent=1 // pred_check_branch
      %38 = sbr.rel (0) target = $region17
    $region16: #{tpu_custom_call.1} parent=1 // pred_region
      %39 = dma.done [#allocation3], 256
    $region17: #{tpu_custom_call.1} parent=1 // pred_fallthru
      _
    // Predicated region
    $region18: #{tpu_custom_call.1} parent=1 // pred_check
      _
    $region19: #{tpu_custom_call.1} parent=1 // pred_check_branch
      %41 = sbr.rel (0) target = $region21
    $region20: #{tpu_custom_call.1} parent=1 // pred_region
      %42 = dma.done [#allocation6], 12288
    $region21: #{tpu_custom_call.1} parent=1 // pred_fallthru
      _
    %v43 = vld [vmem:[#allocation2] sm:$0xff]
    %v44 = vld [vmem:[#allocation2 + $0x8] sm:$0xff]
    %v45 = vld [vmem:[#allocation5] sm:$0xff]
    %v46 = vld [vmem:[#allocation5 + $0x8] sm:$0xff]
    %v47 = vld [vmem:[#allocation5 + $0x10] sm:$0xff]
    %v48 = vld [vmem:[#allocation5 + $0x18] sm:$0xff]
    %v49 = vld [vmem:[%s2] sm:$0x1]
    %v51 = vlaneseq
    %v52 = vshrl.u32 %v51, 7
    %v53 = vsub.s32 0, %v52
    %v54 = vrot.slane %v49, %v53
    %vm56 = vcmask 261120
    %v58 = vsel %vm56, %v43, 0
    %v61 = vsel %vm56, %v44, 0
    %63 = vmatprep.subr.mxu0 0.0
    %64 = vmatpush1.msra.mxu0 %v45
    %65 = vmatprep.subr.mxu0 0.0
    %66 = vmatpush1.msra.mxu0 %v46
    %67 = vmatprep.subr.mxu0 0.0
    %68 = vmatpush1.msra.mxu0 %v47
    %69 = vmatprep.subr.mxu0 0.0
    %70 = vmatpush1.msra.mxu0 %v48
    %71 = vmatprep.subr.mxu0 0.0
    %72 = vmatpush1.msra.mxu0 0.0
    %73 = vmatprep.subr.mxu0 0.0
    %74 = vmatpush1.msra.mxu0 0.0
    %75 = vmatprep.subr.mxu0 0.0
    %76 = vmatpush1.msra.mxu0 0.0
    %77 = vmatprep.subr.mxu0 0.0
    %78 = vmatpush1.msra.mxu0 0.0
    %79 = vmatprep.subr.mxu0 0.0
    %80 = vmatpush1.msra.mxu0 0.0
    %81 = vmatprep.subr.mxu0 0.0
    %82 = vmatpush1.msra.mxu0 0.0
    %83 = vmatprep.subr.mxu0 0.0
    %84 = vmatpush1.msra.mxu0 0.0
    %85 = vmatprep.subr.mxu0 0.0
    %86 = vmatpush1.msra.mxu0 0.0
    %87 = vmatprep.subr.mxu0 0.0
    %88 = vmatpush1.msra.mxu0 0.0
    %89 = vmatprep.subr.mxu0 0.0
    %90 = vmatpush1.msra.mxu0 0.0
    %91 = vmatprep.subr.mxu0 0.0
    %92 = vmatpush1.msra.mxu0 0.0
    %93 = vmatprep.subr.mxu0 0.0
    %94 = vmatpush1.msra.mxu0 0.0
    %95 = vmatprep.subr.mxu0 0.0
    %96 = vmatpush1.msra.mxu0 0.0
    %97 = vmatprep.subr.mxu0 0.0
    %98 = vmatpush1.msra.mxu0 0.0
    %99 = vmatprep.subr.mxu0 0.0
    %100 = vmatpush1.msra.mxu0 0.0
    %101 = vmatprep.subr.mxu0 0.0
    %102 = vmatpush1.msra.mxu0 0.0
    %103 = vmatprep.subr.mxu0 0.0
    %104 = vmatpush1.msra.mxu0 0.0
    %105 = vmatprep.subr.mxu0 0.0
    %106 = vmatpush1.msra.mxu0 0.0
    %107 = vmatprep.subr.mxu0 0.0
    %108 = vmatpush1.msra.mxu0 0.0
    %109 = vmatprep.subr.mxu0 0.0
    %110 = vmatpush1.msra.mxu0 0.0
    %111 = vmatprep.subr.mxu0 0.0
    %112 = vmatpush1.msra.mxu0 0.0
    %113 = vmatprep.subr.mxu0 0.0
    %114 = vmatpush1.msra.mxu0 0.0
    %115 = vmatprep.subr.mxu0 0.0
    %116 = vmatpush1.msra.mxu0 0.0
    %117 = vmatprep.subr.mxu0 0.0
    %118 = vmatpush1.msra.mxu0 0.0
    %119 = vmatprep.subr.mxu0 0.0
    %120 = vmatpush1.msra.mxu0 0.0
    %121 = vmatprep.subr.mxu0 0.0
    %122 = vmatpush1.msra.mxu0 0.0
    %123 = vmatprep.subr.mxu0 0.0
    %124 = vmatpush1.msra.mxu0 0.0
    %125 = vmatprep.subr.mxu0 0.0
    %126 = vmatpush1.msra.mxu0 0.0
    %127 = vmatprep.mubr.f32.mxu0 0.0
    %128 = vmatmul.mubr.f32.gmra.mrb[0].mxu0 %v58
    %v129 = vpop.f32.mrb[0].mxu0
    %v130 = vadd.f32 %v54, %v129
    %v131 = vpop.f32.mrb[0].mxu0
    %132 = vmatprep.mubr.f32.mxu0 0.0
    %133 = vmatmul.mubr.f32.gmra.mrb[0].mxu0 %v61
    %v134 = vpop.f32.mrb[0].mxu0
    %v135 = vadd.f32 %v54, %v134
    %v136 = vpop.f32.mrb[0].mxu0
    %137 = vdwg.mxu0
    %v138 = verf.f32.pop %v130
    %v139 = verf.f32.pop %v135
    %v140 = vadd.f32 %v138, 1.0
    %v141 = vadd.f32 %v139, 1.0
    %v142 = vmul.f32 %v130, %v140
    %v143 = vmul.f32 %v135, %v141
    %s144 = scalar_lea.vmem [#allocation5], 128
    %v145 = vld [vmem:[%s144] sm:$0xff]
    %v146 = vld [vmem:[%s144 + $0x8] sm:$0xff]
    %v147 = vld [vmem:[%s144 + $0x10] sm:$0xff]
    %v148 = vld [vmem:[%s144 + $0x18] sm:$0xff]
    %v149 = vld [vmem:[%s144 + $0x20] sm:$0xff]
    %v150 = vld [vmem:[%s144 + $0x28] sm:$0xff]
    %v151 = vld [vmem:[%s144 + $0x30] sm:$0xff]
    %v152 = vld [vmem:[%s144 + $0x38] sm:$0xff]
    %v153 = vld [vmem:[%s144 + $0x40] sm:$0xff]
    %v154 = vld [vmem:[%s144 + $0x48] sm:$0xff]
    %v155 = vld [vmem:[%s144 + $0x50] sm:$0xff]
    %v156 = vld [vmem:[%s144 + $0x58] sm:$0xff]
    %v157 = vld [vmem:[%s144 + $0x60] sm:$0xff]
    %v158 = vld [vmem:[%s144 + $0x68] sm:$0xff]
    %v159 = vld [vmem:[%s144 + $0x70] sm:$0xff]
    %v160 = vld [vmem:[%s144 + $0x78] sm:$0xff]
    %s161 = scalar_lea.vmem %s2, 1
    %v162 = vld [vmem:[%s161] sm:$0x1]
    %v164 = vlaneseq
    %v165 = vshrl.u32 %v164, 7
    %v166 = vsub.s32 0, %v165
    %v167 = vrot.slane %v162, %v166
    %169 = vmatprep.subr.mxu0 0.0
    %170 = vmatpush1.msra.mxu0 %v145
    %171 = vmatprep.subr.mxu0 0.0
    %172 = vmatpush1.msra.mxu0 %v146
    %173 = vmatprep.subr.mxu0 0.0
    %174 = vmatpush1.msra.mxu0 %v147
    %175 = vmatprep.subr.mxu0 0.0
    %176 = vmatpush1.msra.mxu0 %v148
    %177 = vmatprep.subr.mxu0 0.0
    %178 = vmatpush1.msra.mxu0 %v149
    %179 = vmatprep.subr.mxu0 0.0
    %180 = vmatpush1.msra.mxu0 %v150
    %181 = vmatprep.subr.mxu0 0.0
    %182 = vmatpush1.msra.mxu0 %v151
    %183 = vmatprep.subr.mxu0 0.0
    %184 = vmatpush1.msra.mxu0 %v152
    %185 = vmatprep.subr.mxu0 0.0
    %186 = vmatpush1.msra.mxu0 %v153
    %187 = vmatprep.subr.mxu0 0.0
    %188 = vmatpush1.msra.mxu0 %v154
    %189 = vmatprep.subr.mxu0 0.0
    %190 = vmatpush1.msra.mxu0 %v155
    %191 = vmatprep.subr.mxu0 0.0
    %192 = vmatpush1.msra.mxu0 %v156
    %193 = vmatprep.subr.mxu0 0.0
    %194 = vmatpush1.msra.mxu0 %v157
    %195 = vmatprep.subr.mxu0 0.0
    %196 = vmatpush1.msra.mxu0 %v158
    %197 = vmatprep.subr.mxu0 0.0
    %198 = vmatpush1.msra.mxu0 %v159
    %199 = vmatprep.subr.mxu0 0.0
    %200 = vmatpush1.msra.mxu0 %v160
    %201 = vmatprep.subr.mxu0 0.0
    %202 = vmatpush1.msra.mxu0 0.0
    %203 = vmatprep.subr.mxu0 0.0
    %204 = vmatpush1.msra.mxu0 0.0
    %205 = vmatprep.subr.mxu0 0.0
    %206 = vmatpush1.msra.mxu0 0.0
    %207 = vmatprep.subr.mxu0 0.0
    %208 = vmatpush1.msra.mxu0 0.0
    %209 = vmatprep.subr.mxu0 0.0
    %210 = vmatpush1.msra.mxu0 0.0
    %211 = vmatprep.subr.mxu0 0.0
    %212 = vmatpush1.msra.mxu0 0.0
    %213 = vmatprep.subr.mxu0 0.0
    %214 = vmatpush1.msra.mxu0 0.0
    %215 = vmatprep.subr.mxu0 0.0
    %216 = vmatpush1.msra.mxu0 0.0
    %217 = vmatprep.subr.mxu0 0.0
    %218 = vmatpush1.msra.mxu0 0.0
    %219 = vmatprep.subr.mxu0 0.0
    %220 = vmatpush1.msra.mxu0 0.0
    %221 = vmatprep.subr.mxu0 0.0
    %222 = vmatpush1.msra.mxu0 0.0
    %223 = vmatprep.subr.mxu0 0.0
    %224 = vmatpush1.msra.mxu0 0.0
    %225 = vmatprep.subr.mxu0 0.0
    %226 = vmatpush1.msra.mxu0 0.0
    %227 = vmatprep.subr.mxu0 0.0
    %228 = vmatpush1.msra.mxu0 0.0
    %229 = vmatprep.subr.mxu0 0.0
    %230 = vmatpush1.msra.mxu0 0.0
    %231 = vmatprep.subr.mxu0 0.0
    %232 = vmatpush1.msra.mxu0 0.0
    %233 = vmatprep.mubr.f32.mxu0 0.0
    %234 = vmatmul.mubr.f32.gmra.mrb[0].mxu0 %v142
    %v235 = vpop.f32.mrb[0].mxu0
    %v236 = vadd.f32 %v167, %v235
    %v237 = vpop.f32.mrb[0].mxu0
    %238 = vmatprep.mubr.f32.mxu0 0.0
    %239 = vmatmul.mubr.f32.gmra.mrb[0].mxu0 %v143
    %v240 = vpop.f32.mrb[0].mxu0
    %v241 = vadd.f32 %v167, %v240
    %v242 = vpop.f32.mrb[0].mxu0
    %243 = vdwg.mxu0
    %v244 = verf.f32.pop %v236
    %v245 = verf.f32.pop %v241
    %v246 = vadd.f32 %v244, 1.0
    %v247 = vadd.f32 %v245, 1.0
    %v248 = vmul.f32 %v236, %v246
    %v249 = vmul.f32 %v241, %v247
    %s250 = scalar_lea.vmem [#allocation5], 256
    %v251 = vld [vmem:[%s250] sm:$0xff]
    %v252 = vld [vmem:[%s250 + $0x8] sm:$0xff]
    %v253 = vld [vmem:[%s250 + $0x10] sm:$0xff]
    %v254 = vld [vmem:[%s250 + $0x18] sm:$0xff]
    %v255 = vld [vmem:[%s250 + $0x20] sm:$0xff]
    %v256 = vld [vmem:[%s250 + $0x28] sm:$0xff]
    %v257 = vld [vmem:[%s250 + $0x30] sm:$0xff]
    %v258 = vld [vmem:[%s250 + $0x38] sm:$0xff]
    %v259 = vld [vmem:[%s250 + $0x40] sm:$0xff]
    %v260 = vld [vmem:[%s250 + $0x48] sm:$0xff]
    %v261 = vld [vmem:[%s250 + $0x50] sm:$0xff]
    %v262 = vld [vmem:[%s250 + $0x58] sm:$0xff]
    %v263 = vld [vmem:[%s250 + $0x60] sm:$0xff]
    %v264 = vld [vmem:[%s250 + $0x68] sm:$0xff]
    %v265 = vld [vmem:[%s250 + $0x70] sm:$0xff]
    %v266 = vld [vmem:[%s250 + $0x78] sm:$0xff]
    %s267 = scalar_lea.vmem %s2, 2
    %v268 = vld [vmem:[%s267] sm:$0x1]
    %v270 = vlaneseq
    %v271 = vshrl.u32 %v270, 7
    %v272 = vsub.s32 0, %v271
    %v273 = vrot.slane %v268, %v272
    %275 = vmatprep.subr.mxu0 0.0
    %276 = vmatpush1.msra.mxu0 %v251
    %277 = vmatprep.subr.mxu0 0.0
    %278 = vmatpush1.msra.mxu0 %v252
    %279 = vmatprep.subr.mxu0 0.0
    %280 = vmatpush1.msra.mxu0 %v253
    %281 = vmatprep.subr.mxu0 0.0
    %282 = vmatpush1.msra.mxu0 %v254
    %283 = vmatprep.subr.mxu0 0.0
    %284 = vmatpush1.msra.mxu0 %v255
    %285 = vmatprep.subr.mxu0 0.0
    %286 = vmatpush1.msra.mxu0 %v256
    %287 = vmatprep.subr.mxu0 0.0
    %288 = vmatpush1.msra.mxu0 %v257
    %289 = vmatprep.subr.mxu0 0.0
    %290 = vmatpush1.msra.mxu0 %v258
    %291 = vmatprep.subr.mxu0 0.0
    %292 = vmatpush1.msra.mxu0 %v259
    %293 = vmatprep.subr.mxu0 0.0
    %294 = vmatpush1.msra.mxu0 %v260
    %295 = vmatprep.subr.mxu0 0.0
    %296 = vmatpush1.msra.mxu0 %v261
    %297 = vmatprep.subr.mxu0 0.0
    %298 = vmatpush1.msra.mxu0 %v262
    %299 = vmatprep.subr.mxu0 0.0
    %300 = vmatpush1.msra.mxu0 %v263
    %301 = vmatprep.subr.mxu0 0.0
    %302 = vmatpush1.msra.mxu0 %v264
    %303 = vmatprep.subr.mxu0 0.0
    %304 = vmatpush1.msra.mxu0 %v265
    %305 = vmatprep.subr.mxu0 0.0
    %306 = vmatpush1.msra.mxu0 %v266
    %307 = vmatprep.subr.mxu0 0.0
    %308 = vmatpush1.msra.mxu0 0.0
    %309 = vmatprep.subr.mxu0 0.0
    %310 = vmatpush1.msra.mxu0 0.0
    %311 = vmatprep.subr.mxu0 0.0
    %312 = vmatpush1.msra.mxu0 0.0
    %313 = vmatprep.subr.mxu0 0.0
    %314 = vmatpush1.msra.mxu0 0.0
    %315 = vmatprep.subr.mxu0 0.0
    %316 = vmatpush1.msra.mxu0 0.0
    %317 = vmatprep.subr.mxu0 0.0
    %318 = vmatpush1.msra.mxu0 0.0
    %319 = vmatprep.subr.mxu0 0.0
    %320 = vmatpush1.msra.mxu0 0.0
    %321 = vmatprep.subr.mxu0 0.0
    %322 = vmatpush1.msra.mxu0 0.0
    %323 = vmatprep.subr.mxu0 0.0
    %324 = vmatpush1.msra.mxu0 0.0
    %325 = vmatprep.subr.mxu0 0.0
    %326 = vmatpush1.msra.mxu0 0.0
    %327 = vmatprep.subr.mxu0 0.0
    %328 = vmatpush1.msra.mxu0 0.0
    %329 = vmatprep.subr.mxu0 0.0
    %330 = vmatpush1.msra.mxu0 0.0
    %331 = vmatprep.subr.mxu0 0.0
    %332 = vmatpush1.msra.mxu0 0.0
    %333 = vmatprep.subr.mxu0 0.0
    %334 = vmatpush1.msra.mxu0 0.0
    %335 = vmatprep.subr.mxu0 0.0
    %336 = vmatpush1.msra.mxu0 0.0
    %337 = vmatprep.subr.mxu0 0.0
    %338 = vmatpush1.msra.mxu0 0.0
    %339 = vmatprep.mubr.f32.mxu0 0.0
    %340 = vmatmul.mubr.f32.gmra.mrb[0].mxu0 %v248
    %v341 = vpop.f32.mrb[0].mxu0
    %v342 = vadd.f32 %v273, %v341
    %v343 = vpop.f32.mrb[0].mxu0
    %344 = vmatprep.mubr.f32.mxu0 0.0
    %345 = vmatmul.mubr.f32.gmra.mrb[0].mxu0 %v249
    %v346 = vpop.f32.mrb[0].mxu0
    %v347 = vadd.f32 %v273, %v346
    %v348 = vpop.f32.mrb[0].mxu0
    %349 = vdwg.mxu0
    %v350 = verf.f32.pop %v342
    %v351 = verf.f32.pop %v347
    %v352 = vadd.f32 %v350, 1.0
    %v353 = vadd.f32 %v351, 1.0
    %v354 = vmul.f32 %v342, %v352
    %v355 = vmul.f32 %v347, %v353
    %s356 = scalar_lea.vmem [#allocation5], 384
    %v357 = vld [vmem:[%s356] sm:$0xff]
    %v358 = vld [vmem:[%s356 + $0x8] sm:$0xff]
    %v359 = vld [vmem:[%s356 + $0x10] sm:$0xff]
    %v360 = vld [vmem:[%s356 + $0x18] sm:$0xff]
    %v361 = vld [vmem:[%s356 + $0x20] sm:$0xff]
    %v362 = vld [vmem:[%s356 + $0x28] sm:$0xff]
    %v363 = vld [vmem:[%s356 + $0x30] sm:$0xff]
    %v364 = vld [vmem:[%s356 + $0x38] sm:$0xff]
    %v365 = vld [vmem:[%s356 + $0x40] sm:$0xff]
    %v366 = vld [vmem:[%s356 + $0x48] sm:$0xff]
    %v367 = vld [vmem:[%s356 + $0x50] sm:$0xff]
    %v368 = vld [vmem:[%s356 + $0x58] sm:$0xff]
    %v369 = vld [vmem:[%s356 + $0x60] sm:$0xff]
    %v370 = vld [vmem:[%s356 + $0x68] sm:$0xff]
    %v371 = vld [vmem:[%s356 + $0x70] sm:$0xff]
    %v372 = vld [vmem:[%s356 + $0x78] sm:$0xff]
    %s373 = scalar_lea.vmem %s2, 3
    %v374 = vld [vmem:[%s373] sm:$0x1]
    %v376 = vlaneseq
    %v377 = vshrl.u32 %v376, 7
    %v378 = vsub.s32 0, %v377
    %v379 = vrot.slane %v374, %v378
    %381 = vmatprep.subr.mxu0 0.0
    %382 = vmatpush1.msra.mxu0 %v357
    %383 = vmatprep.subr.mxu0 0.0
    %384 = vmatpush1.msra.mxu0 %v358
    %385 = vmatprep.subr.mxu0 0.0
    %386 = vmatpush1.msra.mxu0 %v359
    %387 = vmatprep.subr.mxu0 0.0
    %388 = vmatpush1.msra.mxu0 %v360
    %389 = vmatprep.subr.mxu0 0.0
    %390 = vmatpush1.msra.mxu0 %v361
    %391 = vmatprep.subr.mxu0 0.0
    %392 = vmatpush1.msra.mxu0 %v362
    %393 = vmatprep.subr.mxu0 0.0
    %394 = vmatpush1.msra.mxu0 %v363
    %395 = vmatprep.subr.mxu0 0.0
    %396 = vmatpush1.msra.mxu0 %v364
    %397 = vmatprep.subr.mxu0 0.0
    %398 = vmatpush1.msra.mxu0 %v365
    %399 = vmatprep.subr.mxu0 0.0
    %400 = vmatpush1.msra.mxu0 %v366
    %401 = vmatprep.subr.mxu0 0.0
    %402 = vmatpush1.msra.mxu0 %v367
    %403 = vmatprep.subr.mxu0 0.0
    %404 = vmatpush1.msra.mxu0 %v368
    %405 = vmatprep.subr.mxu0 0.0
    %406 = vmatpush1.msra.mxu0 %v369
    %407 = vmatprep.subr.mxu0 0.0
    %408 = vmatpush1.msra.mxu0 %v370
    %409 = vmatprep.subr.mxu0 0.0
    %410 = vmatpush1.msra.mxu0 %v371
    %411 = vmatprep.subr.mxu0 0.0
    %412 = vmatpush1.msra.mxu0 %v372
    %413 = vmatprep.subr.mxu0 0.0
    %414 = vmatpush1.msra.mxu0 0.0
    %415 = vmatprep.subr.mxu0 0.0
    %416 = vmatpush1.msra.mxu0 0.0
    %417 = vmatprep.subr.mxu0 0.0
    %418 = vmatpush1.msra.mxu0 0.0
    %419 = vmatprep.subr.mxu0 0.0
    %420 = vmatpush1.msra.mxu0 0.0
    %421 = vmatprep.subr.mxu0 0.0
    %422 = vmatpush1.msra.mxu0 0.0
    %423 = vmatprep.subr.mxu0 0.0
    %424 = vmatpush1.msra.mxu0 0.0
    %425 = vmatprep.subr.mxu0 0.0
    %426 = vmatpush1.msra.mxu0 0.0
    %427 = vmatprep.subr.mxu0 0.0
    %428 = vmatpush1.msra.mxu0 0.0
    %429 = vmatprep.subr.mxu0 0.0
    %430 = vmatpush1.msra.mxu0 0.0
    %431 = vmatprep.subr.mxu0 0.0
    %432 = vmatpush1.msra.mxu0 0.0
    %433 = vmatprep.subr.mxu0 0.0
    %434 = vmatpush1.msra.mxu0 0.0
    %435 = vmatprep.subr.mxu0 0.0
    %436 = vmatpush1.msra.mxu0 0.0
    %437 = vmatprep.subr.mxu0 0.0
    %438 = vmatpush1.msra.mxu0 0.0
    %439 = vmatprep.subr.mxu0 0.0
    %440 = vmatpush1.msra.mxu0 0.0
    %441 = vmatprep.subr.mxu0 0.0
    %442 = vmatpush1.msra.mxu0 0.0
    %443 = vmatprep.subr.mxu0 0.0
    %444 = vmatpush1.msra.mxu0 0.0
    %445 = vmatprep.mubr.f32.mxu0 0.0
    %446 = vmatmul.mubr.f32.gmra.mrb[0].mxu0 %v354
    %v447 = vpop.f32.mrb[0].mxu0
    %v448 = vadd.f32 %v379, %v447
    %v449 = vpop.f32.mrb[0].mxu0
    %450 = vmatprep.mubr.f32.mxu0 0.0
    %451 = vmatmul.mubr.f32.gmra.mrb[0].mxu0 %v355
    %v452 = vpop.f32.mrb[0].mxu0
    %v453 = vadd.f32 %v379, %v452
    %v454 = vpop.f32.mrb[0].mxu0
    %455 = vdwg.mxu0
    %v456 = verf.f32.pop %v448
    %v457 = verf.f32.pop %v453
    %v458 = vadd.f32 %v456, 1.0
    %v459 = vadd.f32 %v457, 1.0
    %v460 = vmul.f32 %v448, %v458
    %v461 = vmul.f32 %v453, %v459
    %s462 = scalar_lea.vmem [#allocation5], 512
    %v463 = vld [vmem:[%s462] sm:$0xff]
    %v464 = vld [vmem:[%s462 + $0x8] sm:$0xff]
    %v465 = vld [vmem:[%s462 + $0x10] sm:$0xff]
    %v466 = vld [vmem:[%s462 + $0x18] sm:$0xff]
    %v467 = vld [vmem:[%s462 + $0x20] sm:$0xff]
    %v468 = vld [vmem:[%s462 + $0x28] sm:$0xff]
    %v469 = vld [vmem:[%s462 + $0x30] sm:$0xff]
    %v470 = vld [vmem:[%s462 + $0x38] sm:$0xff]
    %v471 = vld [vmem:[%s462 + $0x40] sm:$0xff]
    %v472 = vld [vmem:[%s462 + $0x48] sm:$0xff]
    %v473 = vld [vmem:[%s462 + $0x50] sm:$0xff]
    %v474 = vld [vmem:[%s462 + $0x58] sm:$0xff]
    %v475 = vld [vmem:[%s462 + $0x60] sm:$0xff]
    %v476 = vld [vmem:[%s462 + $0x68] sm:$0xff]
    %v477 = vld [vmem:[%s462 + $0x70] sm:$0xff]
    %v478 = vld [vmem:[%s462 + $0x78] sm:$0xff]
    %s479 = scalar_lea.vmem %s2, 4
    %v480 = vld [vmem:[%s479] sm:$0x1]
    %v482 = vlaneseq
    %v483 = vshrl.u32 %v482, 7
    %v484 = vsub.s32 0, %v483
    %v485 = vrot.slane %v480, %v484
    %487 = vmatprep.subr.mxu0 0.0
    %488 = vmatpush1.msra.mxu0 %v463
    %489 = vmatprep.subr.mxu0 0.0
    %490 = vmatpush1.msra.mxu0 %v464
    %491 = vmatprep.subr.mxu0 0.0
    %492 = vmatpush1.msra.mxu0 %v465
    %493 = vmatprep.subr.mxu0 0.0
    %494 = vmatpush1.msra.mxu0 %v466
    %495 = vmatprep.subr.mxu0 0.0
    %496 = vmatpush1.msra.mxu0 %v467
    %497 = vmatprep.subr.mxu0 0.0
    %498 = vmatpush1.msra.mxu0 %v468
    %499 = vmatprep.subr.mxu0 0.0
    %500 = vmatpush1.msra.mxu0 %v469
    %501 = vmatprep.subr.mxu0 0.0
    %502 = vmatpush1.msra.mxu0 %v470
    %503 = vmatprep.subr.mxu0 0.0
    %504 = vmatpush1.msra.mxu0 %v471
    %505 = vmatprep.subr.mxu0 0.0
    %506 = vmatpush1.msra.mxu0 %v472
    %507 = vmatprep.subr.mxu0 0.0
    %508 = vmatpush1.msra.mxu0 %v473
    %509 = vmatprep.subr.mxu0 0.0
    %510 = vmatpush1.msra.mxu0 %v474
    %511 = vmatprep.subr.mxu0 0.0
    %512 = vmatpush1.msra.mxu0 %v475
    %513 = vmatprep.subr.mxu0 0.0
    %514 = vmatpush1.msra.mxu0 %v476
    %515 = vmatprep.subr.mxu0 0.0
    %516 = vmatpush1.msra.mxu0 %v477
    %517 = vmatprep.subr.mxu0 0.0
    %518 = vmatpush1.msra.mxu0 %v478
    %519 = vmatprep.subr.mxu0 0.0
    %520 = vmatpush1.msra.mxu0 0.0
    %521 = vmatprep.subr.mxu0 0.0
    %522 = vmatpush1.msra.mxu0 0.0
    %523 = vmatprep.subr.mxu0 0.0
    %524 = vmatpush1.msra.mxu0 0.0
    %525 = vmatprep.subr.mxu0 0.0
    %526 = vmatpush1.msra.mxu0 0.0
    %527 = vmatprep.subr.mxu0 0.0
    %528 = vmatpush1.msra.mxu0 0.0
    %529 = vmatprep.subr.mxu0 0.0
    %530 = vmatpush1.msra.mxu0 0.0
    %531 = vmatprep.subr.mxu0 0.0
    %532 = vmatpush1.msra.mxu0 0.0
    %533 = vmatprep.subr.mxu0 0.0
    %534 = vmatpush1.msra.mxu0 0.0
    %535 = vmatprep.subr.mxu0 0.0
    %536 = vmatpush1.msra.mxu0 0.0
    %537 = vmatprep.subr.mxu0 0.0
    %538 = vmatpush1.msra.mxu0 0.0
    %539 = vmatprep.subr.mxu0 0.0
    %540 = vmatpush1.msra.mxu0 0.0
    %541 = vmatprep.subr.mxu0 0.0
    %542 = vmatpush1.msra.mxu0 0.0
    %543 = vmatprep.subr.mxu0 0.0
    %544 = vmatpush1.msra.mxu0 0.0
    %545 = vmatprep.subr.mxu0 0.0
    %546 = vmatpush1.msra.mxu0 0.0
    %547 = vmatprep.subr.mxu0 0.0
    %548 = vmatpush1.msra.mxu0 0.0
    %549 = vmatprep.subr.mxu0 0.0
    %550 = vmatpush1.msra.mxu0 0.0
    %551 = vmatprep.mubr.f32.mxu0 0.0
    %552 = vmatmul.mubr.f32.gmra.mrb[0].mxu0 %v460
    %v553 = vpop.f32.mrb[0].mxu0
    %v554 = vadd.f32 %v485, %v553
    %v555 = vpop.f32.mrb[0].mxu0
    %556 = vmatprep.mubr.f32.mxu0 0.0
    %557 = vmatmul.mubr.f32.gmra.mrb[0].mxu0 %v461
    %v558 = vpop.f32.mrb[0].mxu0
    %v559 = vadd.f32 %v485, %v558
    %v560 = vpop.f32.mrb[0].mxu0
    %561 = vdwg.mxu0
    %v562 = verf.f32.pop %v554
    %v563 = verf.f32.pop %v559
    %v564 = vadd.f32 %v562, 1.0
    %v565 = vadd.f32 %v563, 1.0
    %v566 = vmul.f32 %v554, %v564
    %v567 = vmul.f32 %v559, %v565
    %s568 = scalar_lea.vmem [#allocation5], 640
    %v569 = vld [vmem:[%s568] sm:$0xff]
    %v570 = vld [vmem:[%s568 + $0x8] sm:$0xff]
    %v571 = vld [vmem:[%s568 + $0x10] sm:$0xff]
    %v572 = vld [vmem:[%s568 + $0x18] sm:$0xff]
    %v573 = vld [vmem:[%s568 + $0x20] sm:$0xff]
    %v574 = vld [vmem:[%s568 + $0x28] sm:$0xff]
    %v575 = vld [vmem:[%s568 + $0x30] sm:$0xff]
    %v576 = vld [vmem:[%s568 + $0x38] sm:$0xff]
    %v577 = vld [vmem:[%s568 + $0x40] sm:$0xff]
    %v578 = vld [vmem:[%s568 + $0x48] sm:$0xff]
    %v579 = vld [vmem:[%s568 + $0x50] sm:$0xff]
    %v580 = vld [vmem:[%s568 + $0x58] sm:$0xff]
    %v581 = vld [vmem:[%s568 + $0x60] sm:$0xff]
    %v582 = vld [vmem:[%s568 + $0x68] sm:$0xff]
    %v583 = vld [vmem:[%s568 + $0x70] sm:$0xff]
    %v584 = vld [vmem:[%s568 + $0x78] sm:$0xff]
    %s585 = scalar_lea.vmem %s2, 5
    %v586 = vld [vmem:[%s585] sm:$0x1]
    %v588 = vlaneseq
    %v589 = vshrl.u32 %v588, 7
    %v590 = vsub.s32 0, %v589
    %v591 = vrot.slane %v586, %v590
    %593 = vmatprep.subr.mxu0 0.0
    %594 = vmatpush1.msra.mxu0 %v569
    %595 = vmatprep.subr.mxu0 0.0
    %596 = vmatpush1.msra.mxu0 %v570
    %597 = vmatprep.subr.mxu0 0.0
    %598 = vmatpush1.msra.mxu0 %v571
    %599 = vmatprep.subr.mxu0 0.0
    %600 = vmatpush1.msra.mxu0 %v572
    %601 = vmatprep.subr.mxu0 0.0
    %602 = vmatpush1.msra.mxu0 %v573
    %603 = vmatprep.subr.mxu0 0.0
    %604 = vmatpush1.msra.mxu0 %v574
    %605 = vmatprep.subr.mxu0 0.0
    %606 = vmatpush1.msra.mxu0 %v575
    %607 = vmatprep.subr.mxu0 0.0
    %608 = vmatpush1.msra.mxu0 %v576
    %609 = vmatprep.subr.mxu0 0.0
    %610 = vmatpush1.msra.mxu0 %v577
    %611 = vmatprep.subr.mxu0 0.0
    %612 = vmatpush1.msra.mxu0 %v578
    %613 = vmatprep.subr.mxu0 0.0
    %614 = vmatpush1.msra.mxu0 %v579
    %615 = vmatprep.subr.mxu0 0.0
    %616 = vmatpush1.msra.mxu0 %v580
    %617 = vmatprep.subr.mxu0 0.0
    %618 = vmatpush1.msra.mxu0 %v581
    %619 = vmatprep.subr.mxu0 0.0
    %620 = vmatpush1.msra.mxu0 %v582
    %621 = vmatprep.subr.mxu0 0.0
    %622 = vmatpush1.msra.mxu0 %v583
    %623 = vmatprep.subr.mxu0 0.0
    %624 = vmatpush1.msra.mxu0 %v584
    %625 = vmatprep.subr.mxu0 0.0
    %626 = vmatpush1.msra.mxu0 0.0
    %627 = vmatprep.subr.mxu0 0.0
    %628 = vmatpush1.msra.mxu0 0.0
    %629 = vmatprep.subr.mxu0 0.0
    %630 = vmatpush1.msra.mxu0 0.0
    %631 = vmatprep.subr.mxu0 0.0
    %632 = vmatpush1.msra.mxu0 0.0
    %633 = vmatprep.subr.mxu0 0.0
    %634 = vmatpush1.msra.mxu0 0.0
    %635 = vmatprep.subr.mxu0 0.0
    %636 = vmatpush1.msra.mxu0 0.0
    %637 = vmatprep.subr.mxu0 0.0
    %638 = vmatpush1.msra.mxu0 0.0
    %639 = vmatprep.subr.mxu0 0.0
    %640 = vmatpush1.msra.mxu0 0.0
    %641 = vmatprep.subr.mxu0 0.0
    %642 = vmatpush1.msra.mxu0 0.0
    %643 = vmatprep.subr.mxu0 0.0
    %644 = vmatpush1.msra.mxu0 0.0
    %645 = vmatprep.subr.mxu0 0.0
    %646 = vmatpush1.msra.mxu0 0.0
    %647 = vmatprep.subr.mxu0 0.0
    %648 = vmatpush1.msra.mxu0 0.0
    %649 = vmatprep.subr.mxu0 0.0
    %650 = vmatpush1.msra.mxu0 0.0
    %651 = vmatprep.subr.mxu0 0.0
    %652 = vmatpush1.msra.mxu0 0.0
    %653 = vmatprep.subr.mxu0 0.0
    %654 = vmatpush1.msra.mxu0 0.0
    %655 = vmatprep.subr.mxu0 0.0
    %656 = vmatpush1.msra.mxu0 0.0
    %657 = vmatprep.mubr.f32.mxu0 0.0
    %658 = vmatmul.mubr.f32.gmra.mrb[0].mxu0 %v566
    %v659 = vpop.f32.mrb[0].mxu0
    %v660 = vadd.f32 %v591, %v659
    %v661 = vpop.f32.mrb[0].mxu0
    %662 = vmatprep.mubr.f32.mxu0 0.0
    %663 = vmatmul.mubr.f32.gmra.mrb[0].mxu0 %v567
    %v664 = vpop.f32.mrb[0].mxu0
    %v665 = vadd.f32 %v591, %v664
    %v666 = vpop.f32.mrb[0].mxu0
    %667 = vdwg.mxu0
    %668 = vst [vmem:[#allocation7] sm:$0xff] %v660
    %669 = vst [vmem:[#allocation7 + $0x8] sm:$0xff] %v665
    // Predicated region
    $region22: #{tpu_custom_call.1} parent=1 // pred_check
      _
    $region23: #{tpu_custom_call.1} parent=1 // pred_check_branch
      %671 = sbr.rel (0) target = $region25
    $region24: #{tpu_custom_call.1} parent=1 // pred_region
      %s673 = ssub.s32 256, 256
      %674 = vsyncadd [#allocation4], %s673
      %s675 = sshll.u32 [#allocation7], 4
      %s676 = int_to_ptr.vmem [resolvable:$true] %s675
      %681 = dma.vmem_to_hbm [thread:$0]  %s676, 256, %s3, [#allocation4], 128, 128, 8
    $region25: #{tpu_custom_call.1} parent=1 // pred_fallthru
      _
    // Predicated region
    $region26: #{tpu_custom_call.1} parent=1 // pred_check
      _
    $region27: #{tpu_custom_call.1} parent=1 // pred_check_branch
      %683 = sbr.rel (0) target = $region29
    $region28: #{tpu_custom_call.1} parent=1 // pred_region
      %684 = dma.done [#allocation4], 256
    $region29: #{tpu_custom_call.1} parent=1 // pred_fallthru
      _
    %685 = vsyncpa [#allocation3], 1
    %686 = vsyncpa [#allocation6], 1
    %687 = vsyncpa [#allocation4], 1

</llo_original>
